<compile_context>
chip_gen: v7x
topology: tpu7x:2x2x1
jax: 0.10.0
libtpu: 0.0.40
codegen_flags: <defaults>
</compile_context>

<pallas_src>
import functools

import jax
import jax.numpy as jnp
from jax.experimental import pallas as pl
from jax.experimental.pallas import tpu as pltpu

_LANES = 128          # lane width (last dim of every block, keeps stores unmasked)
_MAX_TILE_ROWS = 1024 # rows per grid step (multiple of 8); ~512 KiB/f32 tile/input


def _loss_kernel(out_ref, tgt_ref, grad_ref, tgt2_ref, loss_ref, acc_ref,
                 *, gradient_weight):
    """One grid step: elementwise squared-error contributions of one row-tile."""
    i = pl.program_id(0)

    @pl.when(i == 0)
    def _init():
        acc_ref[...] = jnp.zeros_like(acc_ref)

    # Widen in-register (free on the VPU); accumulation stays in f32.
    d_out = out_ref[...].astype(jnp.float32) - tgt_ref[...].astype(jnp.float32)
    d_grad = grad_ref[...].astype(jnp.float32) - tgt2_ref[...].astype(jnp.float32)

    # Steady state = pure VPU: square + weighted add into a tile-shaped resident
    # accumulator.  No cross-lane reduction and no scalar RMW per iteration.
    acc_ref[...] += d_out * d_out + gradient_weight * (d_grad * d_grad)

    @pl.when(i == pl.num_programs(0) - 1)
    def _finalize():
        loss_ref[0, 0] = jnp.sum(acc_ref[...])


def _to_lane_dense(x, padded_elems):
    """Flatten x, zero-pad to `padded_elems`, reshape to a lane-dense (rows, 128) slab.

    Zero padding contributes exactly 0 to the squared-error sums (0 - 0)^2.
    """
    flat = x.reshape(-1)
    pad = padded_elems - flat.shape[0]
    if pad:
        flat = jnp.pad(flat, (0, pad))
    return flat.reshape(padded_elems // _LANES, _LANES)


def custom_loss_pallas(outputs, targets, gradients, targets2, gradient_weight):
    """Pallas implementation of CustomLoss.forward given precomputed `gradients`."""
    n = max(int(outputs.size), int(gradients.size))
    rows = pl.cdiv(n, _LANES)
    tile_rows = min(_MAX_TILE_ROWS, ((rows + 7) // 8) * 8)   # multiple of 8
    padded_rows = ((rows + tile_rows - 1) // tile_rows) * tile_rows
    padded_elems = padded_rows * _LANES
    num_tiles = padded_rows // tile_rows

    # Native-dtype, lane-dense slabs (no f32 copies materialized in HBM).
    out2d = _to_lane_dense(outputs, padded_elems)
    tgt2d = _to_lane_dense(targets, padded_elems)
    grad2d = _to_lane_dense(gradients, padded_elems)
    tgt22d = _to_lane_dense(targets2, padded_elems)

    def _row_tile_idx(i):
        return (i, 0)

    tile_specs = [
        pl.BlockSpec((tile_rows, _LANES), _row_tile_idx) for _ in range(4)
    ]

    bytes_accessed = sum(
        int(a.size) * a.dtype.itemsize for a in (out2d, tgt2d, grad2d, tgt22d)
    ) + 4  # + scalar output

    kernel = functools.partial(_loss_kernel,
                               gradient_weight=float(gradient_weight))

    loss = pl.pallas_call(
        kernel,
        out_shape=jax.ShapeDtypeStruct((1, 1), jnp.float32),
        grid=(num_tiles,),
        in_specs=tile_specs,
        out_specs=pl.BlockSpec((1, 1), lambda i: (0, 0),
                               memory_space=pltpu.MemorySpace.SMEM),
        scratch_shapes=[pltpu.VMEM((tile_rows, _LANES), jnp.float32)],
        compiler_params=pltpu.CompilerParams(
            dimension_semantics=("arbitrary",),        # reduction axis
            vmem_limit_bytes=32 * 1024 * 1024,         # headroom on v5e default
        ),
        cost_estimate=pl.CostEstimate(
            flops=6 * padded_elems,                    # 2 subs, 2 muls, 1 fma, 1 add (per elem, approx)
            transcendentals=0,
            bytes_accessed=bytes_accessed,
        ),
    )(out2d, tgt2d, grad2d, tgt22d)
    return loss[0, 0]


def custom_loss(model_fn, inputs, targets, targets2, gradient_weight):
    """Full CustomLoss semantics: outputs = model_fn(inputs), gradients via jax.vjp
    with a ones cotangent (== torch.autograd.grad(outputs, inputs, ones_like(outputs))),
    then the loss reductions in the Pallas kernel."""
    # TODO(synk): fusing the model forward/VJP into the kernel (MXU matmul) would save
    # one HBM round-trip of outputs/gradients, but only applies when the model is a
    # small known op; kept as plain-JAX glue for generality.
    outputs, vjp_fn = jax.vjp(model_fn, inputs)
    (gradients,) = vjp_fn(jnp.ones_like(outputs))
    return custom_loss_pallas(outputs, targets, gradients, targets2,
                              gradient_weight)


if __name__ == "__main__":
    key = jax.random.PRNGKey(0)
    k_x, k_w, k_b, k_t, k_t2 = jax.random.split(key, 5)

    batch, hidden = 2, 32
    gradient_weight = 0.5

    # Deterministic synthetic "model" producing outputs from inputs (linear layer).
    W = jax.random.normal(k_w, (hidden, hidden), dtype=jnp.float32) * 0.1
    b = jax.random.normal(k_b, (hidden,), dtype=jnp.float32) * 0.1

    def model_fn(x):
        return x @ W + b

    inputs = jax.random.normal(k_x, (batch, hidden), dtype=jnp.float32)
    targets = jax.random.normal(k_t, (batch, hidden), dtype=jnp.float32)
    targets2 = jax.random.normal(k_t2, (batch, hidden), dtype=jnp.float32)

    loss = custom_loss(model_fn, inputs, targets, targets2, gradient_weight)
    loss = jax.block_until_ready(loss)

    # Pure-JAX reference check (same math outside Pallas).
    outputs, vjp_fn = jax.vjp(model_fn, inputs)
    (gradients,) = vjp_fn(jnp.ones_like(outputs))
    ref = jnp.sum((outputs - targets) ** 2) + gradient_weight * jnp.sum(
        (gradients - targets2) ** 2
    )
    assert jnp.allclose(loss, ref, rtol=1e-5, atol=1e-5), (loss, ref)

    print("KERNEL_OK")
</pallas_src>

<mosaic_0001>
module attributes {stable_mosaic.version = 11 : i64} {
  func.func @_loss_kernel(%arg0: i32, %arg1: memref<8x128xf32, #tpu.memory_space<vmem>>, %arg2: memref<8x128xf32, #tpu.memory_space<vmem>>, %arg3: memref<8x128xf32, #tpu.memory_space<vmem>>, %arg4: memref<8x128xf32, #tpu.memory_space<vmem>>, %arg5: memref<1x1xf32, #tpu.memory_space<smem>>, %arg6: memref<8x128xf32, #tpu.memory_space<vmem>>) attributes {dimension_semantics = [#tpu.dimension_semantics<arbitrary>], iteration_bounds = array<i64: 1>, scalar_prefetch = 0 : i64, scratch_operands = 1 : i64, tpu.core_type = #tpu.core_type<tc>, window_params = [{transform_indices = @transform_0, window_bounds = array<i64: 8, 128>}, {transform_indices = @transform_1, window_bounds = array<i64: 8, 128>}, {transform_indices = @transform_2, window_bounds = array<i64: 8, 128>}, {transform_indices = @transform_3, window_bounds = array<i64: 8, 128>}, {transform_indices = @transform_4, window_bounds = array<i64: 1, 1>}]} {
    %c0_i32 = arith.constant 0 : i32
    %0 = arith.cmpi eq, %arg0, %c0_i32 : i32
    %1 = arith.extui %0 : i1 to i32
    %c0_i32_0 = arith.constant 0 : i32
    %2 = arith.cmpi ne, %1, %c0_i32_0 : i32
    scf.if %2 {
      %cst_14 = arith.constant 0.000000e+00 : f32
      %20 = vector.broadcast %cst_14 : f32 to vector<8x128xf32>
      %c0_15 = arith.constant 0 : index
      %c0_16 = arith.constant 0 : index
      %21 = vector.load %arg6[%c0_15, %c0_16] : memref<8x128xf32, #tpu.memory_space<vmem>>, vector<8x128xf32>
      tpu.vector_store %arg6[%c0_15, %c0_16], %20 {strides = array<i32>} : memref<8x128xf32, #tpu.memory_space<vmem>>, vector<8x128xf32>,
    } else {
    }
    %c0 = arith.constant 0 : index
    %c0_1 = arith.constant 0 : index
    %3 = vector.load %arg1[%c0, %c0_1] : memref<8x128xf32, #tpu.memory_space<vmem>>, vector<8x128xf32>
    %c0_2 = arith.constant 0 : index
    %c0_3 = arith.constant 0 : index
    %4 = vector.load %arg2[%c0_2, %c0_3] : memref<8x128xf32, #tpu.memory_space<vmem>>, vector<8x128xf32>
    %5 = arith.subf %3, %4 : vector<8x128xf32>
    %c0_4 = arith.constant 0 : index
    %c0_5 = arith.constant 0 : index
    %6 = vector.load %arg3[%c0_4, %c0_5] : memref<8x128xf32, #tpu.memory_space<vmem>>, vector<8x128xf32>
    %c0_6 = arith.constant 0 : index
    %c0_7 = arith.constant 0 : index
    %7 = vector.load %arg4[%c0_6, %c0_7] : memref<8x128xf32, #tpu.memory_space<vmem>>, vector<8x128xf32>
    %8 = arith.subf %6, %7 : vector<8x128xf32>
    %c0_8 = arith.constant 0 : index
    %c0_9 = arith.constant 0 : index
    %9 = vector.load %arg6[%c0_8, %c0_9] : memref<8x128xf32, #tpu.memory_space<vmem>>, vector<8x128xf32>
    %10 = arith.mulf %5, %5 : vector<8x128xf32>
    %11 = arith.mulf %8, %8 : vector<8x128xf32>
    %cst = arith.constant 5.000000e-01 : f32
    %12 = vector.broadcast %cst : f32 to vector<8x128xf32>
    %13 = arith.mulf %12, %11 : vector<8x128xf32>
    %14 = arith.addf %10, %13 : vector<8x128xf32>
    %15 = arith.addf %9, %14 : vector<8x128xf32>
    %c0_10 = arith.constant 0 : index
    %c0_11 = arith.constant 0 : index
    %16 = vector.load %arg6[%c0_10, %c0_11] : memref<8x128xf32, #tpu.memory_space<vmem>>, vector<8x128xf32>
    tpu.vector_store %arg6[%c0_10, %c0_11], %15 {strides = array<i32>} : memref<8x128xf32, #tpu.memory_space<vmem>>, vector<8x128xf32>,
    %c0_i32_12 = arith.constant 0 : i32
    %17 = arith.cmpi eq, %arg0, %c0_i32_12 : i32
    %18 = arith.extui %17 : i1 to i32
    %c0_i32_13 = arith.constant 0 : i32
    %19 = arith.cmpi ne, %18, %c0_i32_13 : i32
    scf.if %19 {
      %c0_14 = arith.constant 0 : index
      %c0_15 = arith.constant 0 : index
      %20 = vector.load %arg6[%c0_14, %c0_15] : memref<8x128xf32, #tpu.memory_space<vmem>>, vector<8x128xf32>
      %21 = vector.shape_cast %20 : vector<8x128xf32> to vector<1x8x128xf32>
      %cst_16 = arith.constant dense<0.000000e+00> : vector<1xf32>
      %22 = vector.multi_reduction <add>, %21, %cst_16 [1, 2] : vector<1x8x128xf32> to vector<1xf32>
      %23 = vector.shape_cast %22 : vector<1xf32> to vector<1x1x1xf32>
      %24 = vector.extract %23[0, 0, 0] : f32 from vector<1x1x1xf32>
      %c0_17 = arith.constant 0 : index
      %c0_18 = arith.constant 0 : index
      %25 = memref.load %arg5[%c0_17, %c0_18] : memref<1x1xf32, #tpu.memory_space<smem>>
      memref.store %24, %arg5[%c0_17, %c0_18] : memref<1x1xf32, #tpu.memory_space<smem>>
    } else {
    }
    return
  }
  func.func @transform_0(%arg0: i32) -> (i32, i32) {
    %c0_i32 = arith.constant 0 : i32
    %c0_i32_0 = arith.constant 0 : i32
    return %arg0, %c0_i32 : i32, i32
  }
  func.func @transform_1(%arg0: i32) -> (i32, i32) {
    %c0_i32 = arith.constant 0 : i32
    %c0_i32_0 = arith.constant 0 : i32
    return %arg0, %c0_i32 : i32, i32
  }
  func.func @transform_2(%arg0: i32) -> (i32, i32) {
    %c0_i32 = arith.constant 0 : i32
    %c0_i32_0 = arith.constant 0 : i32
    return %arg0, %c0_i32 : i32, i32
  }
  func.func @transform_3(%arg0: i32) -> (i32, i32) {
    %c0_i32 = arith.constant 0 : i32
    %c0_i32_0 = arith.constant 0 : i32
    return %arg0, %c0_i32 : i32, i32
  }
  func.func @transform_4(%arg0: i32) -> (i32, i32) {
    %c0_i32 = arith.constant 0 : i32
    %c0_i32_0 = arith.constant 0 : i32
    %c0_i32_1 = arith.constant 0 : i32
    return %c0_i32, %c0_i32_0 : i32, i32
  }
}

</mosaic_0001>

<llo_original>
// kernel: tpu_custom_call.1
$region0: #{tpu_custom_call.1}
  #allocation0 [shape = 'u32[]', space=smem, size = 0x4, offset = 0x4, fixed_abs, tag = 'smem constant byte address 0x4 - core index']
  #allocation1 [shape = 'u32[144,128]{1,0:T(1,128)}', space=vmem, size = 0x12000, scoped, tag = 'internal scratch']
  #allocation2 [shape = 'f32[8,128]{1,0:T(8,128)}', space=vmem, size = 0x1000, scoped, tag = 'scratch operand']
  %s0 = inlined_call_operand.hbm [shape: f32[8,128], index: 0, kind: input, shape index: {}]
  %s1 = inlined_call_operand.hbm [shape: f32[8,128], index: 1, kind: input, shape index: {}]
  %s2 = inlined_call_operand.hbm [shape: f32[8,128], index: 2, kind: input, shape index: {}]
  %s3 = inlined_call_operand.vmem [shape: f32[8,128], index: 3, kind: input, shape index: {}]
  %s4 = inlined_call_operand.hbm [shape: f32[1,1], index: 4, kind: output, shape index: {}]
  %s5 = sld [smem:[#allocation0]]
  $region46: #{tpu_custom_call.1} parent=0
    _
  %s7 = ssub.s32 1, %s5
  %s8 = scalar_select 0, %s7, %s5
  $region1: #{tpu_custom_call.1} parent=0
    #allocation3 [shape = 'u8[4096]{0}', space=vmem, size = 0x1000, scoped, tag = 'input window, operand 0, single buffered']
    #allocation4 [shape = 's32[1]{0}', space=sflag, size = 0x4, scoped, tag = 'scoped memory for tpu_custom_call.1']
    #allocation5 [shape = 's32[1]{0}', space=sflag, size = 0x4, scoped, tag = 'scoped memory for tpu_custom_call.1']
    #allocation6 [shape = 'u8[4096]{0}', space=vmem, size = 0x1000, scoped, tag = 'input window, operand 1, single buffered']
    #allocation7 [shape = 's32[1]{0}', space=sflag, size = 0x4, scoped, tag = 'scoped memory for tpu_custom_call.1']
    #allocation8 [shape = 'u8[4096]{0}', space=vmem, size = 0x1000, scoped, tag = 'input window, operand 2, single buffered']
    #allocation9 [shape = 'u8[512]{0}', space=smem, size = 0x200, scoped, tag = 'output window, operand 0, single buffered']
    %9 = vsyncpa [#allocation4], 0
    %10 = vsyncpa [#allocation7], 0
    %11 = vsyncpa [#allocation5], 0
    // Predicated region
    $region2: #{tpu_custom_call.1} parent=1 // pred_check
      _
    $region3: #{tpu_custom_call.1} parent=1 // pred_check_branch
      %13 = sbr.rel (0) target = $region5
    $region4: #{tpu_custom_call.1} parent=1 // pred_region
      %s15 = ssub.s32 128, 128
      %16 = vsyncadd [#allocation4], %s15
      %s18 = sshll.u32 [#allocation3], 4
      %s19 = int_to_ptr.vmem [resolvable:$true] %s18
      %21 = dma.hbm_to_vmem [thread:$0]  %s0, 128, %s19, [#allocation4]
    $region5: #{tpu_custom_call.1} parent=1 // pred_fallthru
      _
    // Predicated region
    $region6: #{tpu_custom_call.1} parent=1 // pred_check
      _
    $region7: #{tpu_custom_call.1} parent=1 // pred_check_branch
      %23 = sbr.rel (0) target = $region9
    $region8: #{tpu_custom_call.1} parent=1 // pred_region
      %s25 = ssub.s32 128, 128
      %26 = vsyncadd [#allocation7], %s25
      %s28 = sshll.u32 [#allocation6], 4
      %s29 = int_to_ptr.vmem [resolvable:$true] %s28
      %31 = dma.hbm_to_vmem [thread:$0]  %s1, 128, %s29, [#allocation7]
    $region9: #{tpu_custom_call.1} parent=1 // pred_fallthru
      _
    // Predicated region
    $region10: #{tpu_custom_call.1} parent=1 // pred_check
      _
    $region11: #{tpu_custom_call.1} parent=1 // pred_check_branch
      %33 = sbr.rel (0) target = $region13
    $region12: #{tpu_custom_call.1} parent=1 // pred_region
      %s35 = ssub.s32 128, 128
      %36 = vsyncadd [#allocation7], %s35
      %s38 = sshll.u32 [#allocation8], 4
      %s39 = int_to_ptr.vmem [resolvable:$true] %s38
      %41 = dma.hbm_to_vmem [thread:$0]  %s2, 128, %s39, [#allocation7]
    $region13: #{tpu_custom_call.1} parent=1 // pred_fallthru
      _
    // Predicated region
    $region14: #{tpu_custom_call.1} parent=1 // pred_check
      _
    $region15: #{tpu_custom_call.1} parent=1 // pred_check_branch
      %43 = sbr.rel (0) target = $region17
    $region16: #{tpu_custom_call.1} parent=1 // pred_region
      _
    $region17: #{tpu_custom_call.1} parent=1 // pred_fallthru
      _
    // Predicated region
    $region18: #{tpu_custom_call.1} parent=1 // pred_check
      _
    $region19: #{tpu_custom_call.1} parent=1 // pred_check_branch
      %45 = sbr.rel (0) target = $region21
    $region20: #{tpu_custom_call.1} parent=1 // pred_region
      %46 = dma.done [#allocation4], 128
    $region21: #{tpu_custom_call.1} parent=1 // pred_fallthru
      _
    // Predicated region
    $region22: #{tpu_custom_call.1} parent=1 // pred_check
      _
    $region23: #{tpu_custom_call.1} parent=1 // pred_check_branch
      %48 = sbr.rel (0) target = $region25
    $region24: #{tpu_custom_call.1} parent=1 // pred_region
      %49 = dma.done [#allocation7], 128
    $region25: #{tpu_custom_call.1} parent=1 // pred_fallthru
      _
    // Predicated region
    $region26: #{tpu_custom_call.1} parent=1 // pred_check
      _
    $region27: #{tpu_custom_call.1} parent=1 // pred_check_branch
      %51 = sbr.rel (0) target = $region29
    $region28: #{tpu_custom_call.1} parent=1 // pred_region
      %52 = dma.done [#allocation7], 128
    $region29: #{tpu_custom_call.1} parent=1 // pred_fallthru
      _
    %p53 = scmp.eq.s32.totalorder 0, 0
    // Predicated region
    $region30: #{tpu_custom_call.1} parent=1 // pred_check
      %p54 = pneg %p53
    $region31: #{tpu_custom_call.1} parent=1 // pred_check_branch
      %56 = sbr.rel (%p54) target = $region33
    $region32: #{tpu_custom_call.1} parent=1 // pred_region
      %57 = vst [vmem:[#allocation2] sm:$0xff] 0.0
    $region33: #{tpu_custom_call.1} parent=1 // pred_fallthru
      _
    %v58 = vld [vmem:[#allocation3] sm:$0xff]
    %v59 = vld [vmem:[#allocation6] sm:$0xff]
    %v60 = vsub.f32 %v58, %v59
    %v61 = vld [vmem:[#allocation8] sm:$0xff]
    %v62 = vld [vmem:[%s3] sm:$0xff]
    %v63 = vsub.f32 %v61, %v62
    %v64 = vld [vmem:[#allocation2] sm:$0xff]
    %v65 = vmul.f32 %v60, %v60
    %v66 = vmul.f32 %v63, %v63
    %v67 = vmul.f32 %v66, 0.5
    %v68 = vadd.f32 %v65, %v67
    %v69 = vadd.f32 %v64, %v68
    %70 = vst [vmem:[#allocation2] sm:$0xff] %v69
    // Predicated region
    $region34: #{tpu_custom_call.1} parent=1 // pred_check
      %p71 = pneg %p53
    $region35: #{tpu_custom_call.1} parent=1 // pred_check_branch
      %73 = sbr.rel (%p71) target = $region37
    $region36: #{tpu_custom_call.1} parent=1 // pred_region
      %v74 = vld [vmem:[#allocation2] sm:$0xff]
      %75 = vadd.xlane.f32.xlu0 %v74
      %v76 = vpop.xlane.xlu0 %75
      %v77 = vrot.slane %v76, 4
      %v78 = vadd.f32 %v76, %v77
      %v79 = vrot.slane %v78, 2
      %v80 = vadd.f32 %v78, %v79
      %v81 = vrot.slane %v80, 1
      %v82 = vadd.f32 %v80, %v81
      %s83 = vtos %v82
      %s84 = scalar_lea.smem [#allocation9], 0
      %85 = sst [smem:[%s84]] %s83
    $region37: #{tpu_custom_call.1} parent=1 // pred_fallthru
      _
    // Predicated region
    $region38: #{tpu_custom_call.1} parent=1 // pred_check
      _
    $region39: #{tpu_custom_call.1} parent=1 // pred_check_branch
      %87 = sbr.rel (0) target = $region41
    $region40: #{tpu_custom_call.1} parent=1 // pred_region
      %s89 = ssub.s32 16, 16
      %90 = vsyncadd [#allocation5], %s89
      %93 = dma.smem_to_hbm [#allocation9], 16, %s4, [#allocation5]
    $region41: #{tpu_custom_call.1} parent=1 // pred_fallthru
      _
    // Predicated region
    $region42: #{tpu_custom_call.1} parent=1 // pred_check
      _
    $region43: #{tpu_custom_call.1} parent=1 // pred_check_branch
      %95 = sbr.rel (0) target = $region45
    $region44: #{tpu_custom_call.1} parent=1 // pred_region
      %96 = dma.done [#allocation5], 16
    $region45: #{tpu_custom_call.1} parent=1 // pred_fallthru
      _
    %97 = sfence
    %98 = vsyncpa [#allocation4], 1
    %99 = vsyncpa [#allocation7], 1
    %100 = vsyncpa [#allocation5], 1

</llo_original>
